<compile_context>
chip_gen: v7x
topology: tpu7x:2x2x1
jax: 0.10.0
libtpu: 0.0.40
codegen_flags: <defaults>
</compile_context>

<pallas_src>
import jax
import jax.numpy as jnp
from jax import lax
from jax.experimental import pallas as pl
from jax.experimental.pallas import tpu as pltpu

HIDDEN = 128                  # hidden_size (small-shape stand-in for 512)
NUM_ACTIONS = 8               # len(action_map)
INPUT_DIM = 2 * HIDDEN + 1    # vision + instruction + history_action scalar
LN_EPS = 1e-5                 # torch.nn.LayerNorm default

# Single weight buffer, bf16, shape [7H, H]:
#   rows [0   , 3H): folded (W_v @ W_out) over [vis | ins | hist-block]
#   rows [3H  , 4H): ffn.W1
#   rows [4H  , 5H): ffn.W2
#   rows [5H  , 6H): head.W1
#   rows [6H  , 7H): head.W2 (columns zero-padded to H)
# Vector buffer, f32, shape [9, H]:
#   0: folded bias (b_v @ W_out + b_out)
#   1: attn LN gamma   2: attn LN beta
#   3: ffn b1          4: ffn b2
#   5: norm gamma      6: norm beta
#   7: head b1         8: head b2 (zero-padded)


def seq2seq_kernel(x_ref, w_ref, vec_ref, out_ref):
    H = HIDDEN
    x = x_ref[...]                         # [B, 3H] f32 (merged input slab)
    vec = vec_ref[...]                     # [9, H]  f32

    def row(i):                            # [1, H]
        return vec[i][None, :]

    def mm(a, r0, r1):                     # bf16 MXU matmul, f32 accumulate
        return jnp.dot(a.astype(jnp.bfloat16), w_ref[r0:r1, :],
                       preferred_element_type=jnp.float32)

    def layernorm(h, g, b):                # biased variance, like torch
        mu = jnp.mean(h, axis=-1, keepdims=True)
        var = jnp.mean((h - mu) * (h - mu), axis=-1, keepdims=True)
        return (h - mu) * lax.rsqrt(var + LN_EPS) * g + b

    def silu(h):                           # exp + reciprocal both on EUP
        return h * jax.nn.sigmoid(h)

    # ---- Attention over a single (unsqueezed) token ----------------------
    # softmax over the singleton key axis == 1 exactly, so context == W_v(x);
    # W_q / W_k are dead on this path and W_out is folded into W_v at pack
    # time -> one K=3H matmul.
    attn = layernorm(mm(x, 0, 3 * H) + row(0), row(1), row(2))   # [B, H]

    # ---- First forward call: LSTM state is None -> fused = attn output ---
    fused = attn

    # ---- FFN + residual + LayerNorm ---------------------------------------
    h1 = silu(mm(fused, 3 * H, 4 * H) + row(3))
    ffn = mm(h1, 4 * H, 5 * H) + row(4)
    fused2 = layernorm(fused + ffn, row(5), row(6))

    # ---- Action head (dense 128-lane store; logits sliced outside) --------
    a1 = silu(mm(fused2, 5 * H, 6 * H) + row(7))
    out_ref[...] = mm(a1, 6 * H, 7 * H) + row(8)                  # [B, H]


def _pack_inputs(vision_feats, instr_feats, history_action):
    """[B,H] vis, [B,H] ins, [B,1] hist -> one lane-aligned [B, 3H] slab."""
    hist_block = jnp.pad(history_action.astype(jnp.float32),
                         ((0, 0), (0, HIDDEN - 1)))               # [B, H]
    return jnp.concatenate([vision_feats.astype(jnp.float32),
                            instr_feats.astype(jnp.float32),
                            hist_block], axis=-1)                 # [B, 3H]


def _run_steps(x_steps, w_stack, vec_stack):
    """grid=(T,) rollout: weights stay VMEM-resident across all steps."""
    T, B, _ = x_steps.shape
    flops_per_step = 2 * B * HIDDEN * (7 * HIDDEN)                # 1 K=3H + 4 K=H matmuls
    cost = pl.CostEstimate(
        flops=T * flops_per_step,
        transcendentals=T * 2 * B * HIDDEN,
        bytes_accessed=(w_stack.size * 2 + vec_stack.size * 4
                        + x_steps.size * 4 + T * B * HIDDEN * 4))
    out_padded = pl.pallas_call(
        seq2seq_kernel,
        out_shape=jax.ShapeDtypeStruct((T, B, HIDDEN), jnp.float32),
        grid=(T,),
        in_specs=[
            pl.BlockSpec((None, B, 3 * HIDDEN), lambda t: (t, 0, 0)),
            # constant index_map -> weights DMA'd once, resident across steps
            pl.BlockSpec((7 * HIDDEN, HIDDEN), lambda t: (0, 0)),
            pl.BlockSpec((vec_stack.shape[0], HIDDEN), lambda t: (0, 0)),
        ],
        out_specs=pl.BlockSpec((None, B, HIDDEN), lambda t: (t, 0, 0)),
        compiler_params=pltpu.CompilerParams(
            dimension_semantics=("arbitrary",)),
        cost_estimate=cost,
    )(x_steps, w_stack, vec_stack)
    return out_padded[..., :NUM_ACTIONS]                          # [T, B, A]


@jax.jit
def seq2seq_forward(vision_feats, instr_feats, history_action, w_stack, vec_stack):
    """Single forward call (matches the module's first forward)."""
    x = _pack_inputs(vision_feats, instr_feats, history_action)[None]   # [1,B,3H]
    return _run_steps(x, w_stack, vec_stack)[0]                          # [B, A]


@jax.jit
def seq2seq_rollout(x_steps, w_stack, vec_stack):
    """T independent first-call forwards in one pallas_call (amortized launch
    + weight DMA).  x_steps: [T, B, 3H] pre-packed per-step inputs."""
    return _run_steps(x_steps, w_stack, vec_stack)


def init_params(key):
    """Deterministic parameter init matching the module's shapes (f32)."""
    ks = iter(jax.random.split(key, 16))

    def w(shape, scale=0.02):
        return (scale * jax.random.normal(next(ks), shape)).astype(jnp.float32)

    def b(n):
        return jnp.zeros((n,), jnp.float32)

    return {
        # Attention: W_q/W_k/W_v: (input_dim -> hidden), W_out: (hidden -> hidden)
        "wq": w((INPUT_DIM, HIDDEN)), "bq": b(HIDDEN),
        "wk": w((INPUT_DIM, HIDDEN)), "bk": b(HIDDEN),
        "wv": w((INPUT_DIM, HIDDEN)), "bv": b(HIDDEN),
        "wo": w((HIDDEN, HIDDEN)),    "bo": b(HIDDEN),
        "g_attn": jnp.ones((HIDDEN,), jnp.float32),
        "b_attn": jnp.zeros((HIDDEN,), jnp.float32),
        # ffn: Linear(H,H) -> SiLU -> Linear(H,H)
        "w1": w((HIDDEN, HIDDEN)), "b1": b(HIDDEN),
        "w2": w((HIDDEN, HIDDEN)), "b2": b(HIDDEN),
        # norm_layer
        "g_norm": jnp.ones((HIDDEN,), jnp.float32),
        "b_norm": jnp.zeros((HIDDEN,), jnp.float32),
        # action_head: Linear(H,H) -> SiLU -> Linear(H, num_actions)
        "wa1": w((HIDDEN, HIDDEN)),      "ba1": b(HIDDEN),
        "wa2": w((HIDDEN, NUM_ACTIONS)), "ba2": b(NUM_ACTIONS),
    }


def pack_params(p):
    """Pack f32 module params into the 2 kernel buffers (bf16 + f32)."""
    H = HIDDEN
    wv, wo = p["wv"], p["wo"]
    # Fold W_out into W_v in f32 FIRST, then cast once to bf16 (review item).
    wf = wv @ wo                                           # [2H+1, H]
    bf = p["bv"] @ wo + p["bo"]                            # [H]
    hist_block = jnp.zeros((H, H), jnp.float32).at[0].set(wf[2 * H])
    w_in = jnp.concatenate([wf[:H], wf[H:2 * H], hist_block], axis=0)   # [3H, H]
    wa2_pad = jnp.pad(p["wa2"], ((0, 0), (0, H - NUM_ACTIONS)))
    ba2_pad = jnp.pad(p["ba2"], (0, H - NUM_ACTIONS))
    w_stack = jnp.concatenate(
        [w_in, p["w1"], p["w2"], p["wa1"], wa2_pad], axis=0
    ).astype(jnp.bfloat16)                                 # [7H, H]
    vec_stack = jnp.stack(
        [bf, p["g_attn"], p["b_attn"], p["b1"], p["b2"],
         p["g_norm"], p["b_norm"], p["ba1"], ba2_pad]
    ).astype(jnp.float32)                                  # [9, H]
    return w_stack, vec_stack


def reference_forward(vision_feats, instr_feats, history_action, p):
    """Pure-JAX f32 reference mirroring the PyTorch first-call forward,
    including the full Q/K/softmax path (which evaluates to probability 1)."""
    x = jnp.concatenate([vision_feats, instr_feats, history_action], axis=1)
    lin = lambda h, w, bb: h @ w + bb
    ln = lambda h, g, bb: (h - h.mean(-1, keepdims=True)) / jnp.sqrt(
        h.var(-1, keepdims=True) + LN_EPS) * g + bb
    silu = lambda h: h * jax.nn.sigmoid(h)

    q = lin(x, p["wq"], p["bq"])[:, None, :]
    k = lin(x, p["wk"], p["bk"])[:, None, :]
    v = lin(x, p["wv"], p["bv"])[:, None, :]
    scores = jnp.matmul(q, jnp.swapaxes(k, -2, -1)) / jnp.sqrt(jnp.float32(HIDDEN))
    probs = jax.nn.softmax(scores, axis=-1)                # == 1 (singleton key)
    ctx = jnp.matmul(probs, v)[:, 0, :]
    attn = ln(lin(ctx, p["wo"], p["bo"]), p["g_attn"], p["b_attn"])
    fused = attn
    ffn = lin(silu(lin(fused, p["w1"], p["b1"])), p["w2"], p["b2"])
    fused2 = ln(fused + ffn, p["g_norm"], p["b_norm"])
    return lin(silu(lin(fused2, p["wa1"], p["ba1"])), p["wa2"], p["ba2"])


if __name__ == "__main__":
    key = jax.random.PRNGKey(0)
    k_params, k_vis, k_ins, k_roll = jax.random.split(key, 4)

    batch = 8
    params = init_params(k_params)
    w_stack, vec_stack = pack_params(params)

    # Stand-ins for ResnetEncoder / InstructionEncoder outputs.
    vision_feats = jax.random.normal(k_vis, (batch, HIDDEN), jnp.float32)
    instr_feats = jax.random.normal(k_ins, (batch, HIDDEN), jnp.float32)
    # history_action is None in the module -> defaults to -1 * ones([B, 1])
    history_action = -jnp.ones((batch, 1), jnp.float32)

    # --- single forward call (module semantics) ---------------------------
    logits = seq2seq_forward(vision_feats, instr_feats, history_action,
                             w_stack, vec_stack)
    logits = jax.block_until_ready(logits)
    assert logits.shape == (batch, NUM_ACTIONS), logits.shape
    ref = reference_forward(vision_feats, instr_feats, history_action, params)
    max_err = float(jnp.max(jnp.abs(logits - ref)))
    # bf16 weight storage -> tolerance is loose vs. the pure-f32 reference.
    assert jnp.allclose(logits, ref, atol=2e-2, rtol=2e-2), max_err

    # --- gridded rollout: T steps, one launch, weights VMEM-resident ------
    T = 4
    k_v2, k_i2, k_h2 = jax.random.split(k_roll, 3)
    vis_t = jax.random.normal(k_v2, (T, batch, HIDDEN), jnp.float32)
    ins_t = jax.random.normal(k_i2, (T, batch, HIDDEN), jnp.float32)
    hist_t = jax.random.randint(k_h2, (T, batch, 1), 0, NUM_ACTIONS
                                ).astype(jnp.float32)
    x_steps = jnp.stack([_pack_inputs(vis_t[t], ins_t[t], hist_t[t])
                         for t in range(T)])               # [T, B, 3H]
    logits_t = jax.block_until_ready(
        seq2seq_rollout(x_steps, w_stack, vec_stack))
    assert logits_t.shape == (T, batch, NUM_ACTIONS), logits_t.shape
    for t in range(T):
        ref_t = reference_forward(vis_t[t], ins_t[t], hist_t[t], params)
        err_t = float(jnp.max(jnp.abs(logits_t[t] - ref_t)))
        assert jnp.allclose(logits_t[t], ref_t, atol=2e-2, rtol=2e-2), (t, err_t)

    print("KERNEL_OK")
</pallas_src>

<mosaic_0001>
module attributes {stable_mosaic.version = 11 : i64} {
  func.func @seq2seq_kernel(%arg0: i32, %arg1: memref<1x8x384xf32, #tpu.memory_space<vmem>>, %arg2: memref<896x128xbf16, #tpu.memory_space<vmem>>, %arg3: memref<9x128xf32, #tpu.memory_space<vmem>>, %arg4: memref<1x8x128xf32, #tpu.memory_space<vmem>>) attributes {dimension_semantics = [#tpu.dimension_semantics<arbitrary>], iteration_bounds = array<i64: 1>, scalar_prefetch = 0 : i64, scratch_operands = 0 : i64, tpu.core_type = #tpu.core_type<tc>, window_params = [{transform_indices = @transform_0, window_bounds = array<i64: 1, 8, 384>}, {pipeline_mode = #tpu.pipeline_mode<synchronous>, transform_indices = @transform_1, window_bounds = array<i64: 896, 128>}, {pipeline_mode = #tpu.pipeline_mode<synchronous>, transform_indices = @transform_2, window_bounds = array<i64: 9, 128>}, {transform_indices = @transform_3, window_bounds = array<i64: 1, 8, 128>}]} {
    %c0 = arith.constant 0 : index
    %c0_0 = arith.constant 0 : index
    %c0_1 = arith.constant 0 : index
    %0 = vector.load %arg1[%c0, %c0_0, %c0_1] : memref<1x8x384xf32, #tpu.memory_space<vmem>>, vector<1x8x384xf32>
    %1 = vector.shape_cast %0 : vector<1x8x384xf32> to vector<8x384xf32>
    %c0_2 = arith.constant 0 : index
    %c0_3 = arith.constant 0 : index
    %2 = vector.load %arg3[%c0_2, %c0_3] : memref<9x128xf32, #tpu.memory_space<vmem>>, vector<9x128xf32>
    %3 = arith.truncf %1 : vector<8x384xf32> to vector<8x384xbf16>
    %c0_4 = arith.constant 0 : index
    %c0_5 = arith.constant 0 : index
    %4 = vector.load %arg2[%c0_4, %c0_5] : memref<896x128xbf16, #tpu.memory_space<vmem>>, vector<384x128xbf16>
    %cst = arith.constant dense<0.000000e+00> : vector<8x128xf32>
    %5 = tpu.matmul %3, %4, %cst {dimension_numbers = #tpu.dot_dimension_numbers<[1], [0], [0], [1], [0, 0, 1, 1], [], []>} : vector<8x384xbf16>, vector<384x128xbf16>, vector<8x128xf32> -> vector<8x128xf32>
    %6 = vector.extract_strided_slice %2 {offsets = [0, 0], sizes = [1, 128], strides = [1, 1]} : vector<9x128xf32> to vector<1x128xf32>
    %7 = vector.shape_cast %6 : vector<1x128xf32> to vector<128xf32>
    %8 = vector.shape_cast %7 : vector<128xf32> to vector<1x128xf32>
    %9 = vector.broadcast %8 : vector<1x128xf32> to vector<8x128xf32>
    %10 = arith.addf %5, %9 : vector<8x128xf32>
    %11 = vector.extract_strided_slice %2 {offsets = [1, 0], sizes = [1, 128], strides = [1, 1]} : vector<9x128xf32> to vector<1x128xf32>
    %12 = vector.shape_cast %11 : vector<1x128xf32> to vector<128xf32>
    %13 = vector.shape_cast %12 : vector<128xf32> to vector<1x128xf32>
    %14 = vector.extract_strided_slice %2 {offsets = [2, 0], sizes = [1, 128], strides = [1, 1]} : vector<9x128xf32> to vector<1x128xf32>
    %15 = vector.shape_cast %14 : vector<1x128xf32> to vector<128xf32>
    %16 = vector.shape_cast %15 : vector<128xf32> to vector<1x128xf32>
    %cst_6 = arith.constant dense<0.000000e+00> : vector<8xf32>
    %17 = vector.multi_reduction <add>, %10, %cst_6 [1] : vector<8x128xf32> to vector<8xf32>
    %18 = vector.shape_cast %17 : vector<8xf32> to vector<8x1xf32>
    %cst_7 = arith.constant 1.280000e+02 : f32
    %19 = vector.broadcast %cst_7 : f32 to vector<8x1xf32>
    %20 = arith.divf %18, %19 : vector<8x1xf32>
    %21 = vector.broadcast %20 : vector<8x1xf32> to vector<8x128xf32>
    %22 = arith.subf %10, %21 : vector<8x128xf32>
    %23 = vector.broadcast %20 : vector<8x1xf32> to vector<8x128xf32>
    %24 = arith.subf %10, %23 : vector<8x128xf32>
    %25 = arith.mulf %22, %24 : vector<8x128xf32>
    %cst_8 = arith.constant dense<0.000000e+00> : vector<8xf32>
    %26 = vector.multi_reduction <add>, %25, %cst_8 [1] : vector<8x128xf32> to vector<8xf32>
    %27 = vector.shape_cast %26 : vector<8xf32> to vector<8x1xf32>
    %cst_9 = arith.constant 1.280000e+02 : f32
    %28 = vector.broadcast %cst_9 : f32 to vector<8x1xf32>
    %29 = arith.divf %27, %28 : vector<8x1xf32>
    %30 = vector.broadcast %20 : vector<8x1xf32> to vector<8x128xf32>
    %31 = arith.subf %10, %30 : vector<8x128xf32>
    %cst_10 = arith.constant 9.99999974E-6 : f32
    %32 = vector.broadcast %cst_10 : f32 to vector<8x1xf32>
    %33 = arith.addf %29, %32 : vector<8x1xf32>
    %34 = math.rsqrt %33 : vector<8x1xf32>
    %35 = vector.broadcast %34 : vector<8x1xf32> to vector<8x128xf32>
    %36 = arith.mulf %31, %35 : vector<8x128xf32>
    %37 = vector.broadcast %13 : vector<1x128xf32> to vector<8x128xf32>
    %38 = arith.mulf %36, %37 : vector<8x128xf32>
    %39 = vector.broadcast %16 : vector<1x128xf32> to vector<8x128xf32>
    %40 = arith.addf %38, %39 : vector<8x128xf32>
    %41 = arith.truncf %40 : vector<8x128xf32> to vector<8x128xbf16>
    %c384 = arith.constant 384 : index
    %c0_11 = arith.constant 0 : index
    %42 = vector.load %arg2[%c384, %c0_11] : memref<896x128xbf16, #tpu.memory_space<vmem>>, vector<128x128xbf16>
    %cst_12 = arith.constant dense<0.000000e+00> : vector<8x128xf32>
    %43 = tpu.matmul %41, %42, %cst_12 {dimension_numbers = #tpu.dot_dimension_numbers<[1], [0], [0], [1], [0, 0, 1, 1], [], []>} : vector<8x128xbf16>, vector<128x128xbf16>, vector<8x128xf32> -> vector<8x128xf32>
    %44 = vector.extract_strided_slice %2 {offsets = [3, 0], sizes = [1, 128], strides = [1, 1]} : vector<9x128xf32> to vector<1x128xf32>
    %45 = vector.shape_cast %44 : vector<1x128xf32> to vector<128xf32>
    %46 = vector.shape_cast %45 : vector<128xf32> to vector<1x128xf32>
    %47 = vector.broadcast %46 : vector<1x128xf32> to vector<8x128xf32>
    %48 = arith.addf %43, %47 : vector<8x128xf32>
    %49 = arith.negf %48 : vector<8x128xf32>
    %50 = math.exp %49 : vector<8x128xf32>
    %cst_13 = arith.constant 1.000000e+00 : f32
    %51 = vector.broadcast %cst_13 : f32 to vector<8x128xf32>
    %52 = arith.addf %51, %50 : vector<8x128xf32>
    %53 = arith.divf %51, %52 : vector<8x128xf32>
    %54 = arith.mulf %48, %53 : vector<8x128xf32>
    %55 = arith.truncf %54 : vector<8x128xf32> to vector<8x128xbf16>
    %c512 = arith.constant 512 : index
    %c0_14 = arith.constant 0 : index
    %56 = vector.load %arg2[%c512, %c0_14] : memref<896x128xbf16, #tpu.memory_space<vmem>>, vector<128x128xbf16>
    %cst_15 = arith.constant dense<0.000000e+00> : vector<8x128xf32>
    %57 = tpu.matmul %55, %56, %cst_15 {dimension_numbers = #tpu.dot_dimension_numbers<[1], [0], [0], [1], [0, 0, 1, 1], [], []>} : vector<8x128xbf16>, vector<128x128xbf16>, vector<8x128xf32> -> vector<8x128xf32>
    %58 = vector.extract_strided_slice %2 {offsets = [4, 0], sizes = [1, 128], strides = [1, 1]} : vector<9x128xf32> to vector<1x128xf32>
    %59 = vector.shape_cast %58 : vector<1x128xf32> to vector<128xf32>
    %60 = vector.shape_cast %59 : vector<128xf32> to vector<1x128xf32>
    %61 = vector.broadcast %60 : vector<1x128xf32> to vector<8x128xf32>
    %62 = arith.addf %57, %61 : vector<8x128xf32>
    %63 = arith.addf %40, %62 : vector<8x128xf32>
    %64 = vector.extract_strided_slice %2 {offsets = [5, 0], sizes = [1, 128], strides = [1, 1]} : vector<9x128xf32> to vector<1x128xf32>
    %65 = vector.shape_cast %64 : vector<1x128xf32> to vector<128xf32>
    %66 = vector.shape_cast %65 : vector<128xf32> to vector<1x128xf32>
    %67 = vector.extract_strided_slice %2 {offsets = [6, 0], sizes = [1, 128], strides = [1, 1]} : vector<9x128xf32> to vector<1x128xf32>
    %68 = vector.shape_cast %67 : vector<1x128xf32> to vector<128xf32>
    %69 = vector.shape_cast %68 : vector<128xf32> to vector<1x128xf32>
    %cst_16 = arith.constant dense<0.000000e+00> : vector<8xf32>
    %70 = vector.multi_reduction <add>, %63, %cst_16 [1] : vector<8x128xf32> to vector<8xf32>
    %71 = vector.shape_cast %70 : vector<8xf32> to vector<8x1xf32>
    %cst_17 = arith.constant 1.280000e+02 : f32
    %72 = vector.broadcast %cst_17 : f32 to vector<8x1xf32>
    %73 = arith.divf %71, %72 : vector<8x1xf32>
    %74 = vector.broadcast %73 : vector<8x1xf32> to vector<8x128xf32>
    %75 = arith.subf %63, %74 : vector<8x128xf32>
    %76 = vector.broadcast %73 : vector<8x1xf32> to vector<8x128xf32>
    %77 = arith.subf %63, %76 : vector<8x128xf32>
    %78 = arith.mulf %75, %77 : vector<8x128xf32>
    %cst_18 = arith.constant dense<0.000000e+00> : vector<8xf32>
    %79 = vector.multi_reduction <add>, %78, %cst_18 [1] : vector<8x128xf32> to vector<8xf32>
    %80 = vector.shape_cast %79 : vector<8xf32> to vector<8x1xf32>
    %cst_19 = arith.constant 1.280000e+02 : f32
    %81 = vector.broadcast %cst_19 : f32 to vector<8x1xf32>
    %82 = arith.divf %80, %81 : vector<8x1xf32>
    %83 = vector.broadcast %73 : vector<8x1xf32> to vector<8x128xf32>
    %84 = arith.subf %63, %83 : vector<8x128xf32>
    %cst_20 = arith.constant 9.99999974E-6 : f32
    %85 = vector.broadcast %cst_20 : f32 to vector<8x1xf32>
    %86 = arith.addf %82, %85 : vector<8x1xf32>
    %87 = math.rsqrt %86 : vector<8x1xf32>
    %88 = vector.broadcast %87 : vector<8x1xf32> to vector<8x128xf32>
    %89 = arith.mulf %84, %88 : vector<8x128xf32>
    %90 = vector.broadcast %66 : vector<1x128xf32> to vector<8x128xf32>
    %91 = arith.mulf %89, %90 : vector<8x128xf32>
    %92 = vector.broadcast %69 : vector<1x128xf32> to vector<8x128xf32>
    %93 = arith.addf %91, %92 : vector<8x128xf32>
    %94 = arith.truncf %93 : vector<8x128xf32> to vector<8x128xbf16>
    %c640 = arith.constant 640 : index
    %c0_21 = arith.constant 0 : index
    %95 = vector.load %arg2[%c640, %c0_21] : memref<896x128xbf16, #tpu.memory_space<vmem>>, vector<128x128xbf16>
    %cst_22 = arith.constant dense<0.000000e+00> : vector<8x128xf32>
    %96 = tpu.matmul %94, %95, %cst_22 {dimension_numbers = #tpu.dot_dimension_numbers<[1], [0], [0], [1], [0, 0, 1, 1], [], []>} : vector<8x128xbf16>, vector<128x128xbf16>, vector<8x128xf32> -> vector<8x128xf32>
    %97 = vector.extract_strided_slice %2 {offsets = [7, 0], sizes = [1, 128], strides = [1, 1]} : vector<9x128xf32> to vector<1x128xf32>
    %98 = vector.shape_cast %97 : vector<1x128xf32> to vector<128xf32>
    %99 = vector.shape_cast %98 : vector<128xf32> to vector<1x128xf32>
    %100 = vector.broadcast %99 : vector<1x128xf32> to vector<8x128xf32>
    %101 = arith.addf %96, %100 : vector<8x128xf32>
    %102 = arith.negf %101 : vector<8x128xf32>
    %103 = math.exp %102 : vector<8x128xf32>
    %cst_23 = arith.constant 1.000000e+00 : f32
    %104 = vector.broadcast %cst_23 : f32 to vector<8x128xf32>
    %105 = arith.addf %104, %103 : vector<8x128xf32>
    %106 = arith.divf %104, %105 : vector<8x128xf32>
    %107 = arith.mulf %101, %106 : vector<8x128xf32>
    %108 = arith.truncf %107 : vector<8x128xf32> to vector<8x128xbf16>
    %c768 = arith.constant 768 : index
    %c0_24 = arith.constant 0 : index
    %109 = vector.load %arg2[%c768, %c0_24] : memref<896x128xbf16, #tpu.memory_space<vmem>>, vector<128x128xbf16>
    %cst_25 = arith.constant dense<0.000000e+00> : vector<8x128xf32>
    %110 = tpu.matmul %108, %109, %cst_25 {dimension_numbers = #tpu.dot_dimension_numbers<[1], [0], [0], [1], [0, 0, 1, 1], [], []>} : vector<8x128xbf16>, vector<128x128xbf16>, vector<8x128xf32> -> vector<8x128xf32>
    %111 = vector.extract_strided_slice %2 {offsets = [8, 0], sizes = [1, 128], strides = [1, 1]} : vector<9x128xf32> to vector<1x128xf32>
    %112 = vector.shape_cast %111 : vector<1x128xf32> to vector<128xf32>
    %113 = vector.shape_cast %112 : vector<128xf32> to vector<1x128xf32>
    %114 = vector.broadcast %113 : vector<1x128xf32> to vector<8x128xf32>
    %115 = arith.addf %110, %114 : vector<8x128xf32>
    %c0_26 = arith.constant 0 : index
    %c0_27 = arith.constant 0 : index
    %c0_28 = arith.constant 0 : index
    %116 = vector.load %arg4[%c0_26, %c0_27, %c0_28] : memref<1x8x128xf32, #tpu.memory_space<vmem>>, vector<1x8x128xf32>
    %117 = vector.shape_cast %116 : vector<1x8x128xf32> to vector<8x128xf32>
    %118 = vector.shape_cast %115 : vector<8x128xf32> to vector<1x8x128xf32>
    tpu.vector_store %arg4[%c0_26, %c0_27, %c0_28], %118 {strides = array<i32>} : memref<1x8x128xf32, #tpu.memory_space<vmem>>, vector<1x8x128xf32>,
    return
  }
  func.func @transform_0(%arg0: i32) -> (i32, i32, i32) {
    %c0_i32 = arith.constant 0 : i32
    %c0_i32_0 = arith.constant 0 : i32
    %c0_i32_1 = arith.constant 0 : i32
    return %arg0, %c0_i32, %c0_i32_0 : i32, i32, i32
  }
  func.func @transform_1(%arg0: i32) -> (i32, i32) {
    %c0_i32 = arith.constant 0 : i32
    %c0_i32_0 = arith.constant 0 : i32
    %c0_i32_1 = arith.constant 0 : i32
    return %c0_i32, %c0_i32_0 : i32, i32
  }
  func.func @transform_2(%arg0: i32) -> (i32, i32) {
    %c0_i32 = arith.constant 0 : i32
    %c0_i32_0 = arith.constant 0 : i32
    %c0_i32_1 = arith.constant 0 : i32
    return %c0_i32, %c0_i32_0 : i32, i32
  }
  func.func @transform_3(%arg0: i32) -> (i32, i32, i32) {
    %c0_i32 = arith.constant 0 : i32
    %c0_i32_0 = arith.constant 0 : i32
    %c0_i32_1 = arith.constant 0 : i32
    return %arg0, %c0_i32, %c0_i32_0 : i32, i32, i32
  }
}

</mosaic_0001>

<llo_original>
// kernel: seq2seq_forward.1
$region0: #{seq2seq_forward.1}
  #allocation0 [shape = 'u32[]', space=smem, size = 0x4, offset = 0x4, fixed_abs, tag = 'smem constant byte address 0x4 - core index']
  #allocation1 [shape = 'u32[144,128]{1,0:T(1,128)}', space=vmem, size = 0x12000, scoped, tag = 'internal scratch']
  %s0 = inlined_call_operand.vmem [shape: f32[1,8,384], index: 0, kind: input, shape index: {}]
  %s1 = inlined_call_operand.hbm [shape: bf16[896,128], index: 1, kind: input, shape index: {}]
  %s2 = inlined_call_operand.vmem [shape: f32[9,128], index: 2, kind: input, shape index: {}]
  %s3 = inlined_call_operand.vmem [shape: f32[1,8,128], index: 3, kind: output, shape index: {}]
  %s4 = sld [smem:[#allocation0]]
  $region26: #{seq2seq_forward.1} parent=0
    _
  %s6 = ssub.s32 1, %s4
  %s7 = scalar_select 0, %s6, %s4
  $region1: #{seq2seq_forward.1} parent=0
    #allocation2 [shape = 'u8[229376]{0}', space=vmem, size = 0x38000, scoped, tag = 'input window, operand 1, single buffered']
    #allocation3 [shape = 's32[1]{0}', space=sflag, size = 0x4, scoped, tag = 'scoped memory for seq2seq_forward.1']
    %8 = vsyncpa [#allocation3], 0
    // Predicated region
    $region2: #{seq2seq_forward.1} parent=1 // pred_check
      _
    $region3: #{seq2seq_forward.1} parent=1 // pred_check_branch
      %10 = sbr.rel (0) target = $region5
    $region4: #{seq2seq_forward.1} parent=1 // pred_region
      _
    $region5: #{seq2seq_forward.1} parent=1 // pred_fallthru
      _
    // Predicated region
    $region6: #{seq2seq_forward.1} parent=1 // pred_check
      _
    $region7: #{seq2seq_forward.1} parent=1 // pred_check_branch
      %12 = sbr.rel (0) target = $region9
    $region8: #{seq2seq_forward.1} parent=1 // pred_region
      %s14 = ssub.s32 7168, 7168
      %15 = vsyncadd [#allocation3], %s14
      %s16 = sshll.u32 [#allocation2], 4
      %s17 = int_to_ptr.vmem [resolvable:$true] %s16
      %22 = dma.hbm_to_vmem [thread:$0]  %s1, 7168, %s17, [#allocation3], 64, 64, 4
    $region9: #{seq2seq_forward.1} parent=1 // pred_fallthru
      _
    // Predicated region
    $region10: #{seq2seq_forward.1} parent=1 // pred_check
      _
    $region11: #{seq2seq_forward.1} parent=1 // pred_check_branch
      %24 = sbr.rel (0) target = $region13
    $region12: #{seq2seq_forward.1} parent=1 // pred_region
      _
    $region13: #{seq2seq_forward.1} parent=1 // pred_fallthru
      _
    // Predicated region
    $region14: #{seq2seq_forward.1} parent=1 // pred_check
      _
    $region15: #{seq2seq_forward.1} parent=1 // pred_check_branch
      %26 = sbr.rel (0) target = $region17
    $region16: #{seq2seq_forward.1} parent=1 // pred_region
      %27 = dma.done [#allocation3], 7168
    $region17: #{seq2seq_forward.1} parent=1 // pred_fallthru
      _
    %v29 = vld [vmem:[%s0] sm:$0xff]
    %v30 = vld [vmem:[%s0 + $0x8] sm:$0xff]
    %v31 = vld [vmem:[%s0 + $0x10] sm:$0xff]
    %v32 = vld [vmem:[%s2] sm:$0xff]
    %v33 = vld [vmem:[%s2 + $0x8] sm:$0x1]
    %v34 = vpack.c.bf16 %v29, %v29
    %v35 = vpack.c.bf16 %v30, %v30
    %v36 = vpack.c.bf16 %v31, %v31
    %v37 = vld [vmem:[#allocation2] sm:$0xf]
    %v38 = vld [vmem:[#allocation2 + $0x4] sm:$0xf]
    %v39 = vld [vmem:[#allocation2 + $0x8] sm:$0xf]
    %v40 = vld [vmem:[#allocation2 + $0xc] sm:$0xf]
    %v41 = vld [vmem:[#allocation2 + $0x10] sm:$0xf]
    %v42 = vld [vmem:[#allocation2 + $0x14] sm:$0xf]
    %v43 = vld [vmem:[#allocation2 + $0x18] sm:$0xf]
    %v44 = vld [vmem:[#allocation2 + $0x1c] sm:$0xf]
    %v45 = vld [vmem:[#allocation2 + $0x20] sm:$0xf]
    %v46 = vld [vmem:[#allocation2 + $0x24] sm:$0xf]
    %v47 = vld [vmem:[#allocation2 + $0x28] sm:$0xf]
    %v48 = vld [vmem:[#allocation2 + $0x2c] sm:$0xf]
    %v49 = vld [vmem:[#allocation2 + $0x30] sm:$0xf]
    %v50 = vld [vmem:[#allocation2 + $0x34] sm:$0xf]
    %v51 = vld [vmem:[#allocation2 + $0x38] sm:$0xf]
    %v52 = vld [vmem:[#allocation2 + $0x3c] sm:$0xf]
    %v53 = vld [vmem:[#allocation2 + $0x40] sm:$0xf]
    %v54 = vld [vmem:[#allocation2 + $0x44] sm:$0xf]
    %v55 = vld [vmem:[#allocation2 + $0x48] sm:$0xf]
    %v56 = vld [vmem:[#allocation2 + $0x4c] sm:$0xf]
    %v57 = vld [vmem:[#allocation2 + $0x50] sm:$0xf]
    %v58 = vld [vmem:[#allocation2 + $0x54] sm:$0xf]
    %v59 = vld [vmem:[#allocation2 + $0x58] sm:$0xf]
    %v60 = vld [vmem:[#allocation2 + $0x5c] sm:$0xf]
    %v61 = vld [vmem:[#allocation2 + $0x60] sm:$0xf]
    %v62 = vld [vmem:[#allocation2 + $0x64] sm:$0xf]
    %v63 = vld [vmem:[#allocation2 + $0x68] sm:$0xf]
    %v64 = vld [vmem:[#allocation2 + $0x6c] sm:$0xf]
    %v65 = vld [vmem:[#allocation2 + $0x70] sm:$0xf]
    %v66 = vld [vmem:[#allocation2 + $0x74] sm:$0xf]
    %v67 = vld [vmem:[#allocation2 + $0x78] sm:$0xf]
    %v68 = vld [vmem:[#allocation2 + $0x7c] sm:$0xf]
    %v69 = vld [vmem:[#allocation2 + $0x80] sm:$0xf]
    %v70 = vld [vmem:[#allocation2 + $0x84] sm:$0xf]
    %v71 = vld [vmem:[#allocation2 + $0x88] sm:$0xf]
    %v72 = vld [vmem:[#allocation2 + $0x8c] sm:$0xf]
    %v73 = vld [vmem:[#allocation2 + $0x90] sm:$0xf]
    %v74 = vld [vmem:[#allocation2 + $0x94] sm:$0xf]
    %v75 = vld [vmem:[#allocation2 + $0x98] sm:$0xf]
    %v76 = vld [vmem:[#allocation2 + $0x9c] sm:$0xf]
    %v77 = vld [vmem:[#allocation2 + $0xa0] sm:$0xf]
    %v78 = vld [vmem:[#allocation2 + $0xa4] sm:$0xf]
    %v79 = vld [vmem:[#allocation2 + $0xa8] sm:$0xf]
    %v80 = vld [vmem:[#allocation2 + $0xac] sm:$0xf]
    %v81 = vld [vmem:[#allocation2 + $0xb0] sm:$0xf]
    %v82 = vld [vmem:[#allocation2 + $0xb4] sm:$0xf]
    %v83 = vld [vmem:[#allocation2 + $0xb8] sm:$0xf]
    %v84 = vld [vmem:[#allocation2 + $0xbc] sm:$0xf]
    %v85 = vlaneseq
    %v86 = vshrl.u32 %v85, 7
    %v87 = vsub.s32 0, %v86
    %v88 = vrot.slane %v32, %v87
    %v137 = vunpack.c.l.b16 %v37
    %v138 = vunpack.c.l.b16 %v38
    %v139 = vunpack.c.l.b16 %v39
    %v140 = vunpack.c.l.b16 %v40
    %v141 = vunpack.c.l.b16 %v41
    %v142 = vunpack.c.l.b16 %v42
    %v143 = vunpack.c.l.b16 %v43
    %v144 = vunpack.c.l.b16 %v44
    %v145 = vunpack.c.l.b16 %v45
    %v146 = vunpack.c.l.b16 %v46
    %v147 = vunpack.c.l.b16 %v47
    %v148 = vunpack.c.l.b16 %v48
    %v149 = vunpack.c.l.b16 %v49
    %v150 = vunpack.c.l.b16 %v50
    %v151 = vunpack.c.l.b16 %v51
    %v152 = vunpack.c.l.b16 %v52
    %v153 = vunpack.c.l.b16 %v53
    %v154 = vunpack.c.l.b16 %v54
    %v155 = vunpack.c.l.b16 %v55
    %v156 = vunpack.c.l.b16 %v56
    %v157 = vunpack.c.l.b16 %v57
    %v158 = vunpack.c.l.b16 %v58
    %v159 = vunpack.c.l.b16 %v59
    %v160 = vunpack.c.l.b16 %v60
    %v161 = vunpack.c.l.b16 %v61
    %v162 = vunpack.c.l.b16 %v62
    %v163 = vunpack.c.l.b16 %v63
    %v164 = vunpack.c.l.b16 %v64
    %v165 = vunpack.c.l.b16 %v65
    %v166 = vunpack.c.l.b16 %v66
    %v167 = vunpack.c.l.b16 %v67
    %v168 = vunpack.c.l.b16 %v68
    %v169 = vunpack.c.l.b16 %v69
    %v170 = vunpack.c.l.b16 %v70
    %v171 = vunpack.c.l.b16 %v71
    %v172 = vunpack.c.l.b16 %v72
    %v173 = vunpack.c.l.b16 %v73
    %v174 = vunpack.c.l.b16 %v74
    %v175 = vunpack.c.l.b16 %v75
    %v176 = vunpack.c.l.b16 %v76
    %v177 = vunpack.c.l.b16 %v77
    %v178 = vunpack.c.l.b16 %v78
    %v179 = vunpack.c.l.b16 %v79
    %v180 = vunpack.c.l.b16 %v80
    %v181 = vunpack.c.l.b16 %v81
    %v182 = vunpack.c.l.b16 %v82
    %v183 = vunpack.c.l.b16 %v83
    %v184 = vunpack.c.l.b16 %v84
    %v185 = vpack.c.b16 %v138, %v137
    %v186 = vpack.c.b16 %v140, %v139
    %v187 = vpack.c.b16 %v142, %v141
    %v188 = vpack.c.b16 %v144, %v143
    %v189 = vpack.c.b16 %v146, %v145
    %v190 = vpack.c.b16 %v148, %v147
    %v191 = vpack.c.b16 %v150, %v149
    %v192 = vpack.c.b16 %v152, %v151
    %v193 = vpack.c.b16 %v154, %v153
    %v194 = vpack.c.b16 %v156, %v155
    %v195 = vpack.c.b16 %v158, %v157
    %v196 = vpack.c.b16 %v160, %v159
    %v197 = vpack.c.b16 %v162, %v161
    %v198 = vpack.c.b16 %v164, %v163
    %v199 = vpack.c.b16 %v166, %v165
    %v200 = vpack.c.b16 %v168, %v167
    %v201 = vpack.c.b16 %v170, %v169
    %v202 = vpack.c.b16 %v172, %v171
    %v203 = vpack.c.b16 %v174, %v173
    %v204 = vpack.c.b16 %v176, %v175
    %v205 = vpack.c.b16 %v178, %v177
    %v206 = vpack.c.b16 %v180, %v179
    %v207 = vpack.c.b16 %v182, %v181
    %v208 = vpack.c.b16 %v184, %v183
    %233 = vmatprep.subr.bf16.mxu0 0
    %234 = vmatpush1.bf16.msra.mxu0 %v185
    %235 = vmatprep.subr.bf16.mxu0 0
    %236 = vmatpush1.bf16.msra.mxu0 %v186
    %237 = vmatprep.subr.bf16.mxu0 0
    %238 = vmatpush1.bf16.msra.mxu0 %v187
    %239 = vmatprep.subr.bf16.mxu0 0
    %240 = vmatpush1.bf16.msra.mxu0 %v188
    %241 = vmatprep.subr.bf16.mxu0 0
    %242 = vmatpush1.bf16.msra.mxu0 %v189
    %243 = vmatprep.subr.bf16.mxu0 0
    %244 = vmatpush1.bf16.msra.mxu0 %v190
    %245 = vmatprep.subr.bf16.mxu0 0
    %246 = vmatpush1.bf16.msra.mxu0 %v191
    %247 = vmatprep.subr.bf16.mxu0 0
    %248 = vmatpush1.bf16.msra.mxu0 %v192
    %249 = vmatprep.subr.bf16.mxu0 0
    %250 = vmatpush1.bf16.msra.mxu0 %v193
    %251 = vmatprep.subr.bf16.mxu0 0
    %252 = vmatpush1.bf16.msra.mxu0 %v194
    %253 = vmatprep.subr.bf16.mxu0 0
    %254 = vmatpush1.bf16.msra.mxu0 %v195
    %255 = vmatprep.subr.bf16.mxu0 0
    %256 = vmatpush1.bf16.msra.mxu0 %v196
    %257 = vmatprep.subr.bf16.mxu0 0
    %258 = vmatpush1.bf16.msra.mxu0 %v197
    %259 = vmatprep.subr.bf16.mxu0 0
    %260 = vmatpush1.bf16.msra.mxu0 %v198
    %261 = vmatprep.subr.bf16.mxu0 0
    %262 = vmatpush1.bf16.msra.mxu0 %v199
    %263 = vmatprep.subr.bf16.mxu0 0
    %264 = vmatpush1.bf16.msra.mxu0 %v200
    %265 = vmatprep.mubr.bf16.mxu0 %v35
    %266 = vmatmul.mubr.bf16.gmra.mrb[0].mxu0 %v34
    %v267 = vpop.f32.mrb[0].mxu0
    %v268 = vadd.f32 %v88, %v267
    %v269 = vpop.f32.mrb[0].mxu0
    %v270 = vpop.f32.mrb[0].mxu0
    %v271 = vpop.f32.mrb[0].mxu0
    %272 = vdwg.mxu0
    %273 = vmatprep.subr.bf16.mxu0 0
    %274 = vmatpush1.bf16.msra.mxu0 %v201
    %275 = vmatprep.subr.bf16.mxu0 0
    %276 = vmatpush1.bf16.msra.mxu0 %v202
    %277 = vmatprep.subr.bf16.mxu0 0
    %278 = vmatpush1.bf16.msra.mxu0 %v203
    %279 = vmatprep.subr.bf16.mxu0 0
    %280 = vmatpush1.bf16.msra.mxu0 %v204
    %281 = vmatprep.subr.bf16.mxu0 0
    %282 = vmatpush1.bf16.msra.mxu0 %v205
    %283 = vmatprep.subr.bf16.mxu0 0
    %284 = vmatpush1.bf16.msra.mxu0 %v206
    %285 = vmatprep.subr.bf16.mxu0 0
    %286 = vmatpush1.bf16.msra.mxu0 %v207
    %287 = vmatprep.subr.bf16.mxu0 0
    %288 = vmatpush1.bf16.msra.mxu0 %v208
    %289 = vmatprep.subr.bf16.mxu0 0
    %290 = vmatpush1.bf16.msra.mxu0 0
    %291 = vmatprep.subr.bf16.mxu0 0
    %292 = vmatpush1.bf16.msra.mxu0 0
    %293 = vmatprep.subr.bf16.mxu0 0
    %294 = vmatpush1.bf16.msra.mxu0 0
    %295 = vmatprep.subr.bf16.mxu0 0
    %296 = vmatpush1.bf16.msra.mxu0 0
    %297 = vmatprep.subr.bf16.mxu0 0
    %298 = vmatpush1.bf16.msra.mxu0 0
    %299 = vmatprep.subr.bf16.mxu0 0
    %300 = vmatpush1.bf16.msra.mxu0 0
    %301 = vmatprep.subr.bf16.mxu0 0
    %302 = vmatpush1.bf16.msra.mxu0 0
    %303 = vmatprep.subr.bf16.mxu0 0
    %304 = vmatpush1.bf16.msra.mxu0 0
    %305 = vmatprep.mubr.bf16.mxu0 0
    %306 = vmatmul.mubr.bf16.gmra.mrb[0].mxu0 %v36
    %v307 = vpop.f32.mrb[0].mxu0
    %v308 = vadd.f32 %v268, %v307
    %v309 = vpop.f32.mrb[0].mxu0
    %v310 = vpop.f32.mrb[0].mxu0
    %v311 = vpop.f32.mrb[0].mxu0
    %312 = vdwg.mxu0
    %313 = vadd.xlane.f32.xlu0 %v308
    %v314 = vpop.xlane.xlu0 %313
    %v315 = vrcp.pop 128.0
    %v316 = vmul.f32 %v314, %v315
    %v317 = vsub.f32 %v308, %v316
    %v318 = vmul.f32 %v317, %v317
    %319 = vadd.xlane.f32.xlu0 %v318
    %v320 = vpop.xlane.xlu0 %319
    %v321 = vmul.f32 %v320, %v315
    %v322 = vadd.f32 %v321, 1e-05
    %v323 = vrsqrt.pop %v322
    %v324 = vmul.f32 %v317, %v323
    %v325 = vlaneseq
    %v326 = vshrl.u32 %v325, 7
    %v327 = vsub.s32 1, %v326
    %v328 = vrot.slane %v32, %v327
    %v329 = vmul.f32 %v324, %v328
    %v330 = vlaneseq
    %v331 = vshrl.u32 %v330, 7
    %v332 = vsub.s32 2, %v331
    %v333 = vrot.slane %v32, %v332
    %v334 = vadd.f32 %v329, %v333
    %v335 = vpack.c.bf16 %v334, %v334
    %v336 = vld [vmem:[#allocation2 + $0xc0] sm:$0xf]
    %v337 = vld [vmem:[#allocation2 + $0xc4] sm:$0xf]
    %v338 = vld [vmem:[#allocation2 + $0xc8] sm:$0xf]
    %v339 = vld [vmem:[#allocation2 + $0xcc] sm:$0xf]
    %v340 = vld [vmem:[#allocation2 + $0xd0] sm:$0xf]
    %v341 = vld [vmem:[#allocation2 + $0xd4] sm:$0xf]
    %v342 = vld [vmem:[#allocation2 + $0xd8] sm:$0xf]
    %v343 = vld [vmem:[#allocation2 + $0xdc] sm:$0xf]
    %v344 = vld [vmem:[#allocation2 + $0xe0] sm:$0xf]
    %v345 = vld [vmem:[#allocation2 + $0xe4] sm:$0xf]
    %v346 = vld [vmem:[#allocation2 + $0xe8] sm:$0xf]
    %v347 = vld [vmem:[#allocation2 + $0xec] sm:$0xf]
    %v348 = vld [vmem:[#allocation2 + $0xf0] sm:$0xf]
    %v349 = vld [vmem:[#allocation2 + $0xf4] sm:$0xf]
    %v350 = vld [vmem:[#allocation2 + $0xf8] sm:$0xf]
    %v351 = vld [vmem:[#allocation2 + $0xfc] sm:$0xf]
    %v352 = vlaneseq
    %v353 = vshrl.u32 %v352, 7
    %v354 = vsub.s32 3, %v353
    %v355 = vrot.slane %v32, %v354
    %v372 = vunpack.c.l.b16 %v336
    %v373 = vunpack.c.l.b16 %v337
    %v374 = vunpack.c.l.b16 %v338
    %v375 = vunpack.c.l.b16 %v339
    %v376 = vunpack.c.l.b16 %v340
    %v377 = vunpack.c.l.b16 %v341
    %v378 = vunpack.c.l.b16 %v342
    %v379 = vunpack.c.l.b16 %v343
    %v380 = vunpack.c.l.b16 %v344
    %v381 = vunpack.c.l.b16 %v345
    %v382 = vunpack.c.l.b16 %v346
    %v383 = vunpack.c.l.b16 %v347
    %v384 = vunpack.c.l.b16 %v348
    %v385 = vunpack.c.l.b16 %v349
    %v386 = vunpack.c.l.b16 %v350
    %v387 = vunpack.c.l.b16 %v351
    %v388 = vpack.c.b16 %v373, %v372
    %v389 = vpack.c.b16 %v375, %v374
    %v390 = vpack.c.b16 %v377, %v376
    %v391 = vpack.c.b16 %v379, %v378
    %v392 = vpack.c.b16 %v381, %v380
    %v393 = vpack.c.b16 %v383, %v382
    %v394 = vpack.c.b16 %v385, %v384
    %v395 = vpack.c.b16 %v387, %v386
    %404 = vmatprep.subr.bf16.mxu0 0
    %405 = vmatpush1.bf16.msra.mxu0 %v388
    %406 = vmatprep.subr.bf16.mxu0 0
    %407 = vmatpush1.bf16.msra.mxu0 %v389
    %408 = vmatprep.subr.bf16.mxu0 0
    %409 = vmatpush1.bf16.msra.mxu0 %v390
    %410 = vmatprep.subr.bf16.mxu0 0
    %411 = vmatpush1.bf16.msra.mxu0 %v391
    %412 = vmatprep.subr.bf16.mxu0 0
    %413 = vmatpush1.bf16.msra.mxu0 %v392
    %414 = vmatprep.subr.bf16.mxu0 0
    %415 = vmatpush1.bf16.msra.mxu0 %v393
    %416 = vmatprep.subr.bf16.mxu0 0
    %417 = vmatpush1.bf16.msra.mxu0 %v394
    %418 = vmatprep.subr.bf16.mxu0 0
    %419 = vmatpush1.bf16.msra.mxu0 %v395
    %420 = vmatprep.subr.bf16.mxu0 0
    %421 = vmatpush1.bf16.msra.mxu0 0
    %422 = vmatprep.subr.bf16.mxu0 0
    %423 = vmatpush1.bf16.msra.mxu0 0
    %424 = vmatprep.subr.bf16.mxu0 0
    %425 = vmatpush1.bf16.msra.mxu0 0
    %426 = vmatprep.subr.bf16.mxu0 0
    %427 = vmatpush1.bf16.msra.mxu0 0
    %428 = vmatprep.subr.bf16.mxu0 0
    %429 = vmatpush1.bf16.msra.mxu0 0
    %430 = vmatprep.subr.bf16.mxu0 0
    %431 = vmatpush1.bf16.msra.mxu0 0
    %432 = vmatprep.subr.bf16.mxu0 0
    %433 = vmatpush1.bf16.msra.mxu0 0
    %434 = vmatprep.subr.bf16.mxu0 0
    %435 = vmatpush1.bf16.msra.mxu0 0
    %436 = vmatprep.mubr.bf16.mxu0 0
    %437 = vmatmul.mubr.bf16.gmra.mrb[0].mxu0 %v335
    %v438 = vpop.f32.mrb[0].mxu0
    %v439 = vadd.f32 %v355, %v438
    %v440 = vpop.f32.mrb[0].mxu0
    %v441 = vpop.f32.mrb[0].mxu0
    %v442 = vpop.f32.mrb[0].mxu0
    %443 = vdwg.mxu0
    %v444 = vxor.u32 %v439, 2147483648
    %v445 = vmul.f32 %v444, 1.442695
    %v446 = vpow.pop %v445
    %v447 = vadd.f32 %v446, 1.0
    %v448 = vrcp.pop %v447
    %v449 = vmul.f32 1.0, %v448
    %v450 = vmul.f32 %v439, %v449
    %v451 = vpack.c.bf16 %v450, %v450
    %v452 = vld [vmem:[#allocation2 + $0x100] sm:$0xf]
    %v453 = vld [vmem:[#allocation2 + $0x104] sm:$0xf]
    %v454 = vld [vmem:[#allocation2 + $0x108] sm:$0xf]
    %v455 = vld [vmem:[#allocation2 + $0x10c] sm:$0xf]
    %v456 = vld [vmem:[#allocation2 + $0x110] sm:$0xf]
    %v457 = vld [vmem:[#allocation2 + $0x114] sm:$0xf]
    %v458 = vld [vmem:[#allocation2 + $0x118] sm:$0xf]
    %v459 = vld [vmem:[#allocation2 + $0x11c] sm:$0xf]
    %v460 = vld [vmem:[#allocation2 + $0x120] sm:$0xf]
    %v461 = vld [vmem:[#allocation2 + $0x124] sm:$0xf]
    %v462 = vld [vmem:[#allocation2 + $0x128] sm:$0xf]
    %v463 = vld [vmem:[#allocation2 + $0x12c] sm:$0xf]
    %v464 = vld [vmem:[#allocation2 + $0x130] sm:$0xf]
    %v465 = vld [vmem:[#allocation2 + $0x134] sm:$0xf]
    %v466 = vld [vmem:[#allocation2 + $0x138] sm:$0xf]
    %v467 = vld [vmem:[#allocation2 + $0x13c] sm:$0xf]
    %v468 = vlaneseq
    %v469 = vshrl.u32 %v468, 7
    %v470 = vsub.s32 4, %v469
    %v471 = vrot.slane %v32, %v470
    %v488 = vunpack.c.l.b16 %v452
    %v489 = vunpack.c.l.b16 %v453
    %v490 = vunpack.c.l.b16 %v454
    %v491 = vunpack.c.l.b16 %v455
    %v492 = vunpack.c.l.b16 %v456
    %v493 = vunpack.c.l.b16 %v457
    %v494 = vunpack.c.l.b16 %v458
    %v495 = vunpack.c.l.b16 %v459
    %v496 = vunpack.c.l.b16 %v460
    %v497 = vunpack.c.l.b16 %v461
    %v498 = vunpack.c.l.b16 %v462
    %v499 = vunpack.c.l.b16 %v463
    %v500 = vunpack.c.l.b16 %v464
    %v501 = vunpack.c.l.b16 %v465
    %v502 = vunpack.c.l.b16 %v466
    %v503 = vunpack.c.l.b16 %v467
    %v504 = vpack.c.b16 %v489, %v488
    %v505 = vpack.c.b16 %v491, %v490
    %v506 = vpack.c.b16 %v493, %v492
    %v507 = vpack.c.b16 %v495, %v494
    %v508 = vpack.c.b16 %v497, %v496
    %v509 = vpack.c.b16 %v499, %v498
    %v510 = vpack.c.b16 %v501, %v500
    %v511 = vpack.c.b16 %v503, %v502
    %520 = vmatprep.subr.bf16.mxu0 0
    %521 = vmatpush1.bf16.msra.mxu0 %v504
    %522 = vmatprep.subr.bf16.mxu0 0
    %523 = vmatpush1.bf16.msra.mxu0 %v505
    %524 = vmatprep.subr.bf16.mxu0 0
    %525 = vmatpush1.bf16.msra.mxu0 %v506
    %526 = vmatprep.subr.bf16.mxu0 0
    %527 = vmatpush1.bf16.msra.mxu0 %v507
    %528 = vmatprep.subr.bf16.mxu0 0
    %529 = vmatpush1.bf16.msra.mxu0 %v508
    %530 = vmatprep.subr.bf16.mxu0 0
    %531 = vmatpush1.bf16.msra.mxu0 %v509
    %532 = vmatprep.subr.bf16.mxu0 0
    %533 = vmatpush1.bf16.msra.mxu0 %v510
    %534 = vmatprep.subr.bf16.mxu0 0
    %535 = vmatpush1.bf16.msra.mxu0 %v511
    %536 = vmatprep.subr.bf16.mxu0 0
    %537 = vmatpush1.bf16.msra.mxu0 0
    %538 = vmatprep.subr.bf16.mxu0 0
    %539 = vmatpush1.bf16.msra.mxu0 0
    %540 = vmatprep.subr.bf16.mxu0 0
    %541 = vmatpush1.bf16.msra.mxu0 0
    %542 = vmatprep.subr.bf16.mxu0 0
    %543 = vmatpush1.bf16.msra.mxu0 0
    %544 = vmatprep.subr.bf16.mxu0 0
    %545 = vmatpush1.bf16.msra.mxu0 0
    %546 = vmatprep.subr.bf16.mxu0 0
    %547 = vmatpush1.bf16.msra.mxu0 0
    %548 = vmatprep.subr.bf16.mxu0 0
    %549 = vmatpush1.bf16.msra.mxu0 0
    %550 = vmatprep.subr.bf16.mxu0 0
    %551 = vmatpush1.bf16.msra.mxu0 0
    %552 = vmatprep.mubr.bf16.mxu0 0
    %553 = vmatmul.mubr.bf16.gmra.mrb[0].mxu0 %v451
    %v554 = vpop.f32.mrb[0].mxu0
    %v555 = vadd.f32 %v471, %v554
    %v556 = vpop.f32.mrb[0].mxu0
    %v557 = vpop.f32.mrb[0].mxu0
    %v558 = vpop.f32.mrb[0].mxu0
    %559 = vdwg.mxu0
    %v560 = vadd.f32 %v334, %v555
    %561 = vadd.xlane.f32.xlu0 %v560
    %v562 = vpop.xlane.xlu0 %561
    %v563 = vmul.f32 %v562, %v315
    %v564 = vsub.f32 %v560, %v563
    %v565 = vmul.f32 %v564, %v564
    %566 = vadd.xlane.f32.xlu0 %v565
    %v567 = vpop.xlane.xlu0 %566
    %v568 = vmul.f32 %v567, %v315
    %v569 = vadd.f32 %v568, 1e-05
    %v570 = vrsqrt.pop %v569
    %v571 = vmul.f32 %v564, %v570
    %v572 = vlaneseq
    %v573 = vshrl.u32 %v572, 7
    %v574 = vsub.s32 5, %v573
    %v575 = vrot.slane %v32, %v574
    %v576 = vmul.f32 %v571, %v575
    %v577 = vlaneseq
    %v578 = vshrl.u32 %v577, 7
    %v579 = vsub.s32 6, %v578
    %v580 = vrot.slane %v32, %v579
    %v581 = vadd.f32 %v576, %v580
    %v582 = vpack.c.bf16 %v581, %v581
    %v583 = vld [vmem:[#allocation2 + $0x140] sm:$0xf]
    %v584 = vld [vmem:[#allocation2 + $0x144] sm:$0xf]
    %v585 = vld [vmem:[#allocation2 + $0x148] sm:$0xf]
    %v586 = vld [vmem:[#allocation2 + $0x14c] sm:$0xf]
    %v587 = vld [vmem:[#allocation2 + $0x150] sm:$0xf]
    %v588 = vld [vmem:[#allocation2 + $0x154] sm:$0xf]
    %v589 = vld [vmem:[#allocation2 + $0x158] sm:$0xf]
    %v590 = vld [vmem:[#allocation2 + $0x15c] sm:$0xf]
    %v591 = vld [vmem:[#allocation2 + $0x160] sm:$0xf]
    %v592 = vld [vmem:[#allocation2 + $0x164] sm:$0xf]
    %v593 = vld [vmem:[#allocation2 + $0x168] sm:$0xf]
    %v594 = vld [vmem:[#allocation2 + $0x16c] sm:$0xf]
    %v595 = vld [vmem:[#allocation2 + $0x170] sm:$0xf]
    %v596 = vld [vmem:[#allocation2 + $0x174] sm:$0xf]
    %v597 = vld [vmem:[#allocation2 + $0x178] sm:$0xf]
    %v598 = vld [vmem:[#allocation2 + $0x17c] sm:$0xf]
    %v599 = vlaneseq
    %v600 = vshrl.u32 %v599, 7
    %v601 = vsub.s32 7, %v600
    %v602 = vrot.slane %v32, %v601
    %v619 = vunpack.c.l.b16 %v583
    %v620 = vunpack.c.l.b16 %v584
    %v621 = vunpack.c.l.b16 %v585
    %v622 = vunpack.c.l.b16 %v586
    %v623 = vunpack.c.l.b16 %v587
    %v624 = vunpack.c.l.b16 %v588
    %v625 = vunpack.c.l.b16 %v589
    %v626 = vunpack.c.l.b16 %v590
    %v627 = vunpack.c.l.b16 %v591
    %v628 = vunpack.c.l.b16 %v592
    %v629 = vunpack.c.l.b16 %v593
    %v630 = vunpack.c.l.b16 %v594
    %v631 = vunpack.c.l.b16 %v595
    %v632 = vunpack.c.l.b16 %v596
    %v633 = vunpack.c.l.b16 %v597
    %v634 = vunpack.c.l.b16 %v598
    %v635 = vpack.c.b16 %v620, %v619
    %v636 = vpack.c.b16 %v622, %v621
    %v637 = vpack.c.b16 %v624, %v623
    %v638 = vpack.c.b16 %v626, %v625
    %v639 = vpack.c.b16 %v628, %v627
    %v640 = vpack.c.b16 %v630, %v629
    %v641 = vpack.c.b16 %v632, %v631
    %v642 = vpack.c.b16 %v634, %v633
    %651 = vmatprep.subr.bf16.mxu0 0
    %652 = vmatpush1.bf16.msra.mxu0 %v635
    %653 = vmatprep.subr.bf16.mxu0 0
    %654 = vmatpush1.bf16.msra.mxu0 %v636
    %655 = vmatprep.subr.bf16.mxu0 0
    %656 = vmatpush1.bf16.msra.mxu0 %v637
    %657 = vmatprep.subr.bf16.mxu0 0
    %658 = vmatpush1.bf16.msra.mxu0 %v638
    %659 = vmatprep.subr.bf16.mxu0 0
    %660 = vmatpush1.bf16.msra.mxu0 %v639
    %661 = vmatprep.subr.bf16.mxu0 0
    %662 = vmatpush1.bf16.msra.mxu0 %v640
    %663 = vmatprep.subr.bf16.mxu0 0
    %664 = vmatpush1.bf16.msra.mxu0 %v641
    %665 = vmatprep.subr.bf16.mxu0 0
    %666 = vmatpush1.bf16.msra.mxu0 %v642
    %667 = vmatprep.subr.bf16.mxu0 0
    %668 = vmatpush1.bf16.msra.mxu0 0
    %669 = vmatprep.subr.bf16.mxu0 0
    %670 = vmatpush1.bf16.msra.mxu0 0
    %671 = vmatprep.subr.bf16.mxu0 0
    %672 = vmatpush1.bf16.msra.mxu0 0
    %673 = vmatprep.subr.bf16.mxu0 0
    %674 = vmatpush1.bf16.msra.mxu0 0
    %675 = vmatprep.subr.bf16.mxu0 0
    %676 = vmatpush1.bf16.msra.mxu0 0
    %677 = vmatprep.subr.bf16.mxu0 0
    %678 = vmatpush1.bf16.msra.mxu0 0
    %679 = vmatprep.subr.bf16.mxu0 0
    %680 = vmatpush1.bf16.msra.mxu0 0
    %681 = vmatprep.subr.bf16.mxu0 0
    %682 = vmatpush1.bf16.msra.mxu0 0
    %683 = vmatprep.mubr.bf16.mxu0 0
    %684 = vmatmul.mubr.bf16.gmra.mrb[0].mxu0 %v582
    %v685 = vpop.f32.mrb[0].mxu0
    %v686 = vadd.f32 %v602, %v685
    %v687 = vpop.f32.mrb[0].mxu0
    %v688 = vpop.f32.mrb[0].mxu0
    %v689 = vpop.f32.mrb[0].mxu0
    %690 = vdwg.mxu0
    %v691 = vxor.u32 %v686, 2147483648
    %v692 = vmul.f32 %v691, 1.442695
    %v693 = vpow.pop %v692
    %v694 = vadd.f32 %v693, 1.0
    %v695 = vrcp.pop %v694
    %v696 = vmul.f32 1.0, %v695
    %v697 = vmul.f32 %v686, %v696
    %v698 = vpack.c.bf16 %v697, %v697
    %v699 = vld [vmem:[#allocation2 + $0x180] sm:$0xf]
    %v700 = vld [vmem:[#allocation2 + $0x184] sm:$0xf]
    %v701 = vld [vmem:[#allocation2 + $0x188] sm:$0xf]
    %v702 = vld [vmem:[#allocation2 + $0x18c] sm:$0xf]
    %v703 = vld [vmem:[#allocation2 + $0x190] sm:$0xf]
    %v704 = vld [vmem:[#allocation2 + $0x194] sm:$0xf]
    %v705 = vld [vmem:[#allocation2 + $0x198] sm:$0xf]
    %v706 = vld [vmem:[#allocation2 + $0x19c] sm:$0xf]
    %v707 = vld [vmem:[#allocation2 + $0x1a0] sm:$0xf]
    %v708 = vld [vmem:[#allocation2 + $0x1a4] sm:$0xf]
    %v709 = vld [vmem:[#allocation2 + $0x1a8] sm:$0xf]
    %v710 = vld [vmem:[#allocation2 + $0x1ac] sm:$0xf]
    %v711 = vld [vmem:[#allocation2 + $0x1b0] sm:$0xf]
    %v712 = vld [vmem:[#allocation2 + $0x1b4] sm:$0xf]
    %v713 = vld [vmem:[#allocation2 + $0x1b8] sm:$0xf]
    %v714 = vld [vmem:[#allocation2 + $0x1bc] sm:$0xf]
    %v715 = vlaneseq
    %v716 = vshrl.u32 %v715, 7
    %v717 = vsub.s32 0, %v716
    %v718 = vrot.slane %v33, %v717
    %v735 = vunpack.c.l.b16 %v699
    %v736 = vunpack.c.l.b16 %v700
    %v737 = vunpack.c.l.b16 %v701
    %v738 = vunpack.c.l.b16 %v702
    %v739 = vunpack.c.l.b16 %v703
    %v740 = vunpack.c.l.b16 %v704
    %v741 = vunpack.c.l.b16 %v705
    %v742 = vunpack.c.l.b16 %v706
    %v743 = vunpack.c.l.b16 %v707
    %v744 = vunpack.c.l.b16 %v708
    %v745 = vunpack.c.l.b16 %v709
    %v746 = vunpack.c.l.b16 %v710
    %v747 = vunpack.c.l.b16 %v711
    %v748 = vunpack.c.l.b16 %v712
    %v749 = vunpack.c.l.b16 %v713
    %v750 = vunpack.c.l.b16 %v714
    %v751 = vpack.c.b16 %v736, %v735
    %v752 = vpack.c.b16 %v738, %v737
    %v753 = vpack.c.b16 %v740, %v739
    %v754 = vpack.c.b16 %v742, %v741
    %v755 = vpack.c.b16 %v744, %v743
    %v756 = vpack.c.b16 %v746, %v745
    %v757 = vpack.c.b16 %v748, %v747
    %v758 = vpack.c.b16 %v750, %v749
    %767 = vmatprep.subr.bf16.mxu0 0
    %768 = vmatpush1.bf16.msra.mxu0 %v751
    %769 = vmatprep.subr.bf16.mxu0 0
    %770 = vmatpush1.bf16.msra.mxu0 %v752
    %771 = vmatprep.subr.bf16.mxu0 0
    %772 = vmatpush1.bf16.msra.mxu0 %v753
    %773 = vmatprep.subr.bf16.mxu0 0
    %774 = vmatpush1.bf16.msra.mxu0 %v754
    %775 = vmatprep.subr.bf16.mxu0 0
    %776 = vmatpush1.bf16.msra.mxu0 %v755
    %777 = vmatprep.subr.bf16.mxu0 0
    %778 = vmatpush1.bf16.msra.mxu0 %v756
    %779 = vmatprep.subr.bf16.mxu0 0
    %780 = vmatpush1.bf16.msra.mxu0 %v757
    %781 = vmatprep.subr.bf16.mxu0 0
    %782 = vmatpush1.bf16.msra.mxu0 %v758
    %783 = vmatprep.subr.bf16.mxu0 0
    %784 = vmatpush1.bf16.msra.mxu0 0
    %785 = vmatprep.subr.bf16.mxu0 0
    %786 = vmatpush1.bf16.msra.mxu0 0
    %787 = vmatprep.subr.bf16.mxu0 0
    %788 = vmatpush1.bf16.msra.mxu0 0
    %789 = vmatprep.subr.bf16.mxu0 0
    %790 = vmatpush1.bf16.msra.mxu0 0
    %791 = vmatprep.subr.bf16.mxu0 0
    %792 = vmatpush1.bf16.msra.mxu0 0
    %793 = vmatprep.subr.bf16.mxu0 0
    %794 = vmatpush1.bf16.msra.mxu0 0
    %795 = vmatprep.subr.bf16.mxu0 0
    %796 = vmatpush1.bf16.msra.mxu0 0
    %797 = vmatprep.subr.bf16.mxu0 0
    %798 = vmatpush1.bf16.msra.mxu0 0
    %799 = vmatprep.mubr.bf16.mxu0 0
    %800 = vmatmul.mubr.bf16.gmra.mrb[0].mxu0 %v698
    %v801 = vpop.f32.mrb[0].mxu0
    %v802 = vadd.f32 %v718, %v801
    %v803 = vpop.f32.mrb[0].mxu0
    %v804 = vpop.f32.mrb[0].mxu0
    %v805 = vpop.f32.mrb[0].mxu0
    %806 = vdwg.mxu0
    %807 = vst [vmem:[%s3] sm:$0xff] %v802
    // Predicated region
    $region18: #{seq2seq_forward.1} parent=1 // pred_check
      _
    $region19: #{seq2seq_forward.1} parent=1 // pred_check_branch
      %809 = sbr.rel (0) target = $region21
    $region20: #{seq2seq_forward.1} parent=1 // pred_region
      _
    $region21: #{seq2seq_forward.1} parent=1 // pred_fallthru
      _
    // Predicated region
    $region22: #{seq2seq_forward.1} parent=1 // pred_check
      _
    $region23: #{seq2seq_forward.1} parent=1 // pred_check_branch
      %811 = sbr.rel (0) target = $region25
    $region24: #{seq2seq_forward.1} parent=1 // pred_region
      _
    $region25: #{seq2seq_forward.1} parent=1 // pred_fallthru
      _
    %812 = vsyncpa [#allocation3], 1

</llo_original>
